<compile_context>
chip_gen: v5e
topology: v5e:2x2
jax: 0.10.0
libtpu: 0.0.40
codegen_flags: <defaults>
</compile_context>

<pallas_src>
import jax
import jax.numpy as jnp
from jax.experimental import pallas as pl
from jax.experimental.pallas import tpu as pltpu


def _res_layernorm_kernel(x_ref, w1_ref, b1_ref, w2_ref, b2_ref, o_ref):
    # Keep x in f32 for an exact residual add; a bf16 copy feeds the MXU.
    x = x_ref[...].astype(jnp.float32)                           # (TB, D)
    xb = x.astype(jnp.bfloat16)

    # Linear 1 (weights already normalized + transposed to (in, out)) + ReLU.
    h = jnp.dot(xb, w1_ref[...], preferred_element_type=jnp.float32)
    h = jnp.maximum(h + b1_ref[...], 0.0)                        # (TB, D) f32

    # Linear 2 + ReLU.
    y = jnp.dot(h.astype(jnp.bfloat16), w2_ref[...],
                preferred_element_type=jnp.float32)
    y = jnp.maximum(y + b2_ref[...], 0.0)

    # Residual.
    o_ref[...] = (y + x).astype(o_ref.dtype)


def res_layernorm(x, v1, g1, b1, v2, g2, b2, *, block_rows=512):
    """x: (B, D); v1/v2: (D, D) PyTorch (out, in); g1/g2: (D, 1); b1/b2: (1, D)."""
    B, D = x.shape

    # --- hoisted weight_norm: w = g * v * rsqrt(||v||_row^2), transposed once
    #     to (in, out) and cast to bf16 outside the per-tile kernel body.
    def _normalize(v, g):
        v = v.astype(jnp.float32)
        inv = jax.lax.rsqrt(jnp.sum(v * v, axis=1, keepdims=True))
        w = (g.astype(jnp.float32).reshape(-1, 1) * inv) * v     # (out, in)
        return w.T.astype(jnp.bfloat16)                          # (in, out)

    w1t = _normalize(v1, g1)
    w2t = _normalize(v2, g2)
    b1r = b1.reshape(1, D).astype(jnp.float32)
    b2r = b2.reshape(1, D).astype(jnp.float32)

    # --- batch tiling: largest sublane-aligned tile up to block_rows.
    tb = min(block_rows, B)
    if tb < B:
        tb = max(8, (tb // 8) * 8)
    grid = (pl.cdiv(B, tb),)

    # VMEM budget: double-buffered f32 x/out tiles + resident bf16 weights
    # (double-buffer allocation) + biases; clamp to [32 MiB, 48 MiB] so it
    # always leaves headroom on v7x's 64 MiB physical VMEM.
    vmem_bytes = 2 * 2 * tb * D * 4 + 2 * 2 * D * D * 2 + 2 * 2 * D * 4
    vmem_limit = max(32 * 1024 * 1024,
                     min(48 * 1024 * 1024, int(1.5 * vmem_bytes)))
    # TODO(synk): for very large D (weights no longer VMEM-resident), add a
    # second grid axis tiling the output-feature dim instead of keeping both
    # full DxD weights resident.

    cost = pl.CostEstimate(
        flops=4 * B * D * D,                    # two (B,D)x(D,D) matmuls
        transcendentals=0,
        bytes_accessed=2 * B * D * 4 + 2 * D * D * 2 + 2 * D * 4,
    )

    return pl.pallas_call(
        _res_layernorm_kernel,
        out_shape=jax.ShapeDtypeStruct(x.shape, x.dtype),
        grid=grid,
        in_specs=[
            pl.BlockSpec((tb, D), lambda i: (i, 0)),   # x: streamed per tile
            pl.BlockSpec((D, D), lambda i: (0, 0)),    # w1^T: resident
            pl.BlockSpec((1, D), lambda i: (0, 0)),    # b1:   resident
            pl.BlockSpec((D, D), lambda i: (0, 0)),    # w2^T: resident
            pl.BlockSpec((1, D), lambda i: (0, 0)),    # b2:   resident
        ],
        out_specs=pl.BlockSpec((tb, D), lambda i: (i, 0)),
        compiler_params=pltpu.CompilerParams(
            dimension_semantics=("parallel",),
            vmem_limit_bytes=vmem_limit,
        ),
        cost_estimate=cost,
    )(x, w1t, b1r, w2t, b2r)


def _reference(x, v1, g1, b1, v2, g2, b2):
    w1 = g1 * v1 / jnp.linalg.norm(v1, axis=1, keepdims=True)
    w2 = g2 * v2 / jnp.linalg.norm(v2, axis=1, keepdims=True)
    h = jax.nn.relu(x @ w1.T + b1.reshape(1, -1))
    y = jax.nn.relu(h @ w2.T + b2.reshape(1, -1))
    return y + x


if __name__ == "__main__":
    # Small but lane-dense demo: D multiple of 128, batch multiple of 8.
    B, D = 64, 128
    key = jax.random.PRNGKey(0)
    ks = jax.random.split(key, 7)

    bound = 1.0 / (D ** 0.5)  # mimic nn.Linear default uniform init scale
    x = jax.random.normal(ks[0], (B, D), dtype=jnp.float32)
    v1 = jax.random.uniform(ks[1], (D, D), minval=-bound, maxval=bound,
                            dtype=jnp.float32)
    v2 = jax.random.uniform(ks[2], (D, D), minval=-bound, maxval=bound,
                            dtype=jnp.float32)
    # weight_norm init: g = ||v||_row at init
    g1 = jnp.linalg.norm(v1, axis=1, keepdims=True)              # (D, 1)
    g2 = jnp.linalg.norm(v2, axis=1, keepdims=True)              # (D, 1)
    b1 = jax.random.uniform(ks[3], (1, D), minval=-bound, maxval=bound,
                            dtype=jnp.float32)
    b2 = jax.random.uniform(ks[4], (1, D), minval=-bound, maxval=bound,
                            dtype=jnp.float32)

    out = res_layernorm(x, v1, g1, b1, v2, g2, b2)
    out = jax.block_until_ready(out)

    ref = _reference(x, v1, g1, b1, v2, g2, b2)
    assert out.shape == (B, D) and out.dtype == x.dtype
    # bf16 MXU inputs with f32 accumulation -> loose-ish tolerance vs f32 ref.
    assert jnp.allclose(out, ref, atol=5e-2, rtol=5e-2), float(
        jnp.max(jnp.abs(out - ref)))
    print("KERNEL_OK")
</pallas_src>

<mosaic_0001>
module attributes {stable_mosaic.version = 11 : i64} {
  func.func @_res_layernorm_kernel(%arg0: i32, %arg1: memref<64x128xf32, #tpu.memory_space<vmem>>, %arg2: memref<128x128xbf16, #tpu.memory_space<vmem>>, %arg3: memref<1x128xf32, #tpu.memory_space<vmem>>, %arg4: memref<128x128xbf16, #tpu.memory_space<vmem>>, %arg5: memref<1x128xf32, #tpu.memory_space<vmem>>, %arg6: memref<64x128xf32, #tpu.memory_space<vmem>>) attributes {dimension_semantics = [#tpu.dimension_semantics<parallel>], iteration_bounds = array<i64: 1>, scalar_prefetch = 0 : i64, scratch_operands = 0 : i64, tpu.core_type = #tpu.core_type<tc>, window_params = [{transform_indices = @transform_0, window_bounds = array<i64: 64, 128>}, {pipeline_mode = #tpu.pipeline_mode<synchronous>, transform_indices = @transform_1, window_bounds = array<i64: 128, 128>}, {pipeline_mode = #tpu.pipeline_mode<synchronous>, transform_indices = @transform_2, window_bounds = array<i64: 1, 128>}, {pipeline_mode = #tpu.pipeline_mode<synchronous>, transform_indices = @transform_3, window_bounds = array<i64: 128, 128>}, {pipeline_mode = #tpu.pipeline_mode<synchronous>, transform_indices = @transform_4, window_bounds = array<i64: 1, 128>}, {transform_indices = @transform_5, window_bounds = array<i64: 64, 128>}]} {
    %c0 = arith.constant 0 : index
    %c0_0 = arith.constant 0 : index
    %0 = vector.load %arg1[%c0, %c0_0] : memref<64x128xf32, #tpu.memory_space<vmem>>, vector<64x128xf32>
    %1 = arith.truncf %0 : vector<64x128xf32> to vector<64x128xbf16>
    %c0_1 = arith.constant 0 : index
    %c0_2 = arith.constant 0 : index
    %2 = vector.load %arg2[%c0_1, %c0_2] : memref<128x128xbf16, #tpu.memory_space<vmem>>, vector<128x128xbf16>
    %cst = arith.constant dense<0.000000e+00> : vector<64x128xf32>
    %3 = tpu.matmul %1, %2, %cst {dimension_numbers = #tpu.dot_dimension_numbers<[1], [0], [0], [1], [0, 0, 1, 1], [], []>} : vector<64x128xbf16>, vector<128x128xbf16>, vector<64x128xf32> -> vector<64x128xf32>
    %c0_3 = arith.constant 0 : index
    %c0_4 = arith.constant 0 : index
    %4 = vector.load %arg3[%c0_3, %c0_4] : memref<1x128xf32, #tpu.memory_space<vmem>>, vector<1x128xf32>
    %5 = vector.broadcast %4 : vector<1x128xf32> to vector<64x128xf32>
    %6 = arith.addf %3, %5 : vector<64x128xf32>
    %cst_5 = arith.constant 0.000000e+00 : f32
    %7 = vector.broadcast %cst_5 : f32 to vector<64x128xf32>
    %8 = arith.maximumf %6, %7 : vector<64x128xf32>
    %9 = arith.truncf %8 : vector<64x128xf32> to vector<64x128xbf16>
    %c0_6 = arith.constant 0 : index
    %c0_7 = arith.constant 0 : index
    %10 = vector.load %arg4[%c0_6, %c0_7] : memref<128x128xbf16, #tpu.memory_space<vmem>>, vector<128x128xbf16>
    %cst_8 = arith.constant dense<0.000000e+00> : vector<64x128xf32>
    %11 = tpu.matmul %9, %10, %cst_8 {dimension_numbers = #tpu.dot_dimension_numbers<[1], [0], [0], [1], [0, 0, 1, 1], [], []>} : vector<64x128xbf16>, vector<128x128xbf16>, vector<64x128xf32> -> vector<64x128xf32>
    %c0_9 = arith.constant 0 : index
    %c0_10 = arith.constant 0 : index
    %12 = vector.load %arg5[%c0_9, %c0_10] : memref<1x128xf32, #tpu.memory_space<vmem>>, vector<1x128xf32>
    %13 = vector.broadcast %12 : vector<1x128xf32> to vector<64x128xf32>
    %14 = arith.addf %11, %13 : vector<64x128xf32>
    %cst_11 = arith.constant 0.000000e+00 : f32
    %15 = vector.broadcast %cst_11 : f32 to vector<64x128xf32>
    %16 = arith.maximumf %14, %15 : vector<64x128xf32>
    %17 = arith.addf %16, %0 : vector<64x128xf32>
    %c0_12 = arith.constant 0 : index
    %c0_13 = arith.constant 0 : index
    %18 = vector.load %arg6[%c0_12, %c0_13] : memref<64x128xf32, #tpu.memory_space<vmem>>, vector<64x128xf32>
    tpu.vector_store %arg6[%c0_12, %c0_13], %17 {strides = array<i32>} : memref<64x128xf32, #tpu.memory_space<vmem>>, vector<64x128xf32>,
    return
  }
  func.func @transform_0(%arg0: i32) -> (i32, i32) {
    %c0_i32 = arith.constant 0 : i32
    %c0_i32_0 = arith.constant 0 : i32
    return %arg0, %c0_i32 : i32, i32
  }
  func.func @transform_1(%arg0: i32) -> (i32, i32) {
    %c0_i32 = arith.constant 0 : i32
    %c0_i32_0 = arith.constant 0 : i32
    %c0_i32_1 = arith.constant 0 : i32
    return %c0_i32, %c0_i32_0 : i32, i32
  }
  func.func @transform_2(%arg0: i32) -> (i32, i32) {
    %c0_i32 = arith.constant 0 : i32
    %c0_i32_0 = arith.constant 0 : i32
    %c0_i32_1 = arith.constant 0 : i32
    return %c0_i32, %c0_i32_0 : i32, i32
  }
  func.func @transform_3(%arg0: i32) -> (i32, i32) {
    %c0_i32 = arith.constant 0 : i32
    %c0_i32_0 = arith.constant 0 : i32
    %c0_i32_1 = arith.constant 0 : i32
    return %c0_i32, %c0_i32_0 : i32, i32
  }
  func.func @transform_4(%arg0: i32) -> (i32, i32) {
    %c0_i32 = arith.constant 0 : i32
    %c0_i32_0 = arith.constant 0 : i32
    %c0_i32_1 = arith.constant 0 : i32
    return %c0_i32, %c0_i32_0 : i32, i32
  }
  func.func @transform_5(%arg0: i32) -> (i32, i32) {
    %c0_i32 = arith.constant 0 : i32
    %c0_i32_0 = arith.constant 0 : i32
    return %arg0, %c0_i32 : i32, i32
  }
}

</mosaic_0001>

<llo_original>
// kernel: tpu_custom_call.1
$region0: #{tpu_custom_call.1}
  #allocation0 [shape = 'u32[]', space=smem, size = 0x4, offset = 0x4, fixed_abs, tag = 'smem constant byte address 0x4 - core index']
  #allocation1 [shape = 'u32[72,128]{1,0:T(1,128)}', space=vmem, size = 0x9000, scoped, tag = 'internal scratch']
  %s0 = inlined_call_operand.hbm [shape: f32[64,128], index: 0, kind: input, shape index: {}]
  %s1 = inlined_call_operand.hbm [shape: bf16[128,128], index: 1, kind: input, shape index: {}]
  %s2 = inlined_call_operand.vmem [shape: f32[1,128], index: 2, kind: input, shape index: {}]
  %s3 = inlined_call_operand.hbm [shape: bf16[128,128], index: 3, kind: input, shape index: {}]
  %s4 = inlined_call_operand.vmem [shape: f32[1,128], index: 4, kind: input, shape index: {}]
  %s5 = inlined_call_operand.hbm [shape: f32[64,128], index: 5, kind: output, shape index: {}]
  %s6 = sld [smem:[#allocation0]]
  $region42: #{tpu_custom_call.1} parent=0
    _
  %s8 = ssub.s32 1, %s6
  %s9 = scalar_select 0, %s8, %s6
  $region1: #{tpu_custom_call.1} parent=0
    #allocation2 [shape = 'u8[32768]{0}', space=vmem, size = 0x8000, scoped, tag = 'input window, operand 0, single buffered']
    #allocation3 [shape = 's32[1]{0}', space=sflag, size = 0x4, scoped, tag = 'scoped memory for tpu_custom_call.1']
    #allocation4 [shape = 's32[1]{0}', space=sflag, size = 0x4, scoped, tag = 'scoped memory for tpu_custom_call.1']
    #allocation5 [shape = 'u8[32768]{0}', space=vmem, size = 0x8000, scoped, tag = 'input window, operand 1, single buffered']
    #allocation6 [shape = 's32[1]{0}', space=sflag, size = 0x4, scoped, tag = 'scoped memory for tpu_custom_call.1']
    #allocation7 [shape = 'u8[32768]{0}', space=vmem, size = 0x8000, scoped, tag = 'input window, operand 3, single buffered']
    #allocation8 [shape = 'u8[32768]{0}', space=vmem, size = 0x8000, scoped, tag = 'output window, operand 0, single buffered']
    %10 = vsyncpa [#allocation3], 0
    %11 = vsyncpa [#allocation6], 0
    %12 = vsyncpa [#allocation4], 0
    // Predicated region
    $region2: #{tpu_custom_call.1} parent=1 // pred_check
      _
    $region3: #{tpu_custom_call.1} parent=1 // pred_check_branch
      %14 = sbr.rel (0) target = $region5
    $region4: #{tpu_custom_call.1} parent=1 // pred_region
      %16 = vsyncadd [#allocation3], 0
      %s17 = sshll.u32 %s0, 4
      %s18 = int_to_ptr.hbm [resolvable:$true] %s17
      %s19 = sshll.u32 [#allocation2], 4
      %s20 = int_to_ptr.vmem [resolvable:$true] %s19
      %25 = dma.hbm_to_vmem [thread:$0]  %s18, 1024, %s20, [#allocation3], 128, 128, 8
    $region5: #{tpu_custom_call.1} parent=1 // pred_fallthru
      _
    // Predicated region
    $region6: #{tpu_custom_call.1} parent=1 // pred_check
      _
    $region7: #{tpu_custom_call.1} parent=1 // pred_check_branch
      %27 = sbr.rel (0) target = $region9
    $region8: #{tpu_custom_call.1} parent=1 // pred_region
      %29 = vsyncadd [#allocation6], 0
      %s30 = sshll.u32 %s1, 4
      %s31 = int_to_ptr.hbm [resolvable:$true] %s30
      %s32 = sshll.u32 [#allocation5], 4
      %s33 = int_to_ptr.vmem [resolvable:$true] %s32
      %38 = dma.hbm_to_vmem [thread:$0]  %s31, 1024, %s33, [#allocation6], 64, 64, 4
    $region9: #{tpu_custom_call.1} parent=1 // pred_fallthru
      _
    // Predicated region
    $region10: #{tpu_custom_call.1} parent=1 // pred_check
      _
    $region11: #{tpu_custom_call.1} parent=1 // pred_check_branch
      %40 = sbr.rel (0) target = $region13
    $region12: #{tpu_custom_call.1} parent=1 // pred_region
      _
    $region13: #{tpu_custom_call.1} parent=1 // pred_fallthru
      _
    // Predicated region
    $region14: #{tpu_custom_call.1} parent=1 // pred_check
      _
    $region15: #{tpu_custom_call.1} parent=1 // pred_check_branch
      %42 = sbr.rel (0) target = $region17
    $region16: #{tpu_custom_call.1} parent=1 // pred_region
      %44 = vsyncadd [#allocation6], 0
      %s45 = sshll.u32 %s3, 4
      %s46 = int_to_ptr.hbm [resolvable:$true] %s45
      %s47 = sshll.u32 [#allocation7], 4
      %s48 = int_to_ptr.vmem [resolvable:$true] %s47
      %53 = dma.hbm_to_vmem [thread:$0]  %s46, 1024, %s48, [#allocation6], 64, 64, 4
    $region17: #{tpu_custom_call.1} parent=1 // pred_fallthru
      _
    // Predicated region
    $region18: #{tpu_custom_call.1} parent=1 // pred_check
      _
    $region19: #{tpu_custom_call.1} parent=1 // pred_check_branch
      %55 = sbr.rel (0) target = $region21
    $region20: #{tpu_custom_call.1} parent=1 // pred_region
      _
    $region21: #{tpu_custom_call.1} parent=1 // pred_fallthru
      _
    // Predicated region
    $region22: #{tpu_custom_call.1} parent=1 // pred_check
      _
    $region23: #{tpu_custom_call.1} parent=1 // pred_check_branch
      %57 = sbr.rel (0) target = $region25
    $region24: #{tpu_custom_call.1} parent=1 // pred_region
      %59 = dma.done [#allocation3], 1024
    $region25: #{tpu_custom_call.1} parent=1 // pred_fallthru
      _
    // Predicated region
    $region26: #{tpu_custom_call.1} parent=1 // pred_check
      _
    $region27: #{tpu_custom_call.1} parent=1 // pred_check_branch
      %61 = sbr.rel (0) target = $region29
    $region28: #{tpu_custom_call.1} parent=1 // pred_region
      %63 = dma.done [#allocation6], 1024
    $region29: #{tpu_custom_call.1} parent=1 // pred_fallthru
      _
    // Predicated region
    $region30: #{tpu_custom_call.1} parent=1 // pred_check
      _
    $region31: #{tpu_custom_call.1} parent=1 // pred_check_branch
      %65 = sbr.rel (0) target = $region33
    $region32: #{tpu_custom_call.1} parent=1 // pred_region
      %67 = dma.done [#allocation6], 1024
    $region33: #{tpu_custom_call.1} parent=1 // pred_fallthru
      _
    %v68 = vld [vmem:[#allocation2] sm:$0xff]
    %v69 = vld [vmem:[#allocation2 + $0x8] sm:$0xff]
    %v70 = vld [vmem:[#allocation2 + $0x10] sm:$0xff]
    %v71 = vld [vmem:[#allocation2 + $0x18] sm:$0xff]
    %v72 = vld [vmem:[#allocation2 + $0x20] sm:$0xff]
    %v73 = vld [vmem:[#allocation2 + $0x28] sm:$0xff]
    %v74 = vld [vmem:[#allocation2 + $0x30] sm:$0xff]
    %v75 = vld [vmem:[#allocation2 + $0x38] sm:$0xff]
    %v76 = vpack.c.bf16 %v69, %v68
    %v77 = vpack.c.bf16 %v71, %v70
    %v78 = vpack.c.bf16 %v73, %v72
    %v79 = vpack.c.bf16 %v75, %v74
    %v80 = vld [vmem:[#allocation5] sm:$0xf]
    %v81 = vld [vmem:[#allocation5 + $0x4] sm:$0xf]
    %v82 = vld [vmem:[#allocation5 + $0x8] sm:$0xf]
    %v83 = vld [vmem:[#allocation5 + $0xc] sm:$0xf]
    %v84 = vld [vmem:[#allocation5 + $0x10] sm:$0xf]
    %v85 = vld [vmem:[#allocation5 + $0x14] sm:$0xf]
    %v86 = vld [vmem:[#allocation5 + $0x18] sm:$0xf]
    %v87 = vld [vmem:[#allocation5 + $0x1c] sm:$0xf]
    %v88 = vld [vmem:[#allocation5 + $0x20] sm:$0xf]
    %v89 = vld [vmem:[#allocation5 + $0x24] sm:$0xf]
    %v90 = vld [vmem:[#allocation5 + $0x28] sm:$0xf]
    %v91 = vld [vmem:[#allocation5 + $0x2c] sm:$0xf]
    %v92 = vld [vmem:[#allocation5 + $0x30] sm:$0xf]
    %v93 = vld [vmem:[#allocation5 + $0x34] sm:$0xf]
    %v94 = vld [vmem:[#allocation5 + $0x38] sm:$0xf]
    %v95 = vld [vmem:[#allocation5 + $0x3c] sm:$0xf]
    %v96 = vld [vmem:[%s2] sm:$0x1]
    %v98 = vperm.slane %v96, 0
    %v116 = vunpack.c.l.b16 %v80
    %v117 = vunpack.c.l.b16 %v81
    %v118 = vunpack.c.l.b16 %v82
    %v119 = vunpack.c.l.b16 %v83
    %v120 = vunpack.c.l.b16 %v84
    %v121 = vunpack.c.l.b16 %v85
    %v122 = vunpack.c.l.b16 %v86
    %v123 = vunpack.c.l.b16 %v87
    %v124 = vunpack.c.l.b16 %v88
    %v125 = vunpack.c.l.b16 %v89
    %v126 = vunpack.c.l.b16 %v90
    %v127 = vunpack.c.l.b16 %v91
    %v128 = vunpack.c.l.b16 %v92
    %v129 = vunpack.c.l.b16 %v93
    %v130 = vunpack.c.l.b16 %v94
    %v131 = vunpack.c.l.b16 %v95
    %v132 = vpack.c.b16 %v117, %v116
    %v133 = vpack.c.b16 %v119, %v118
    %v134 = vpack.c.b16 %v121, %v120
    %v135 = vpack.c.b16 %v123, %v122
    %v136 = vpack.c.b16 %v125, %v124
    %v137 = vpack.c.b16 %v127, %v126
    %v138 = vpack.c.b16 %v129, %v128
    %v139 = vpack.c.b16 %v131, %v130
    %148 = vmatpush.bf16.msra.mxu0 %v139
    %149 = vmatpush.bf16.msra.mxu0 %v138
    %150 = vmatpush.bf16.msra.mxu0 %v137
    %151 = vmatpush.bf16.msra.mxu0 %v136
    %152 = vmatpush.bf16.msra.mxu0 %v135
    %153 = vmatpush.bf16.msra.mxu0 %v134
    %154 = vmatpush.bf16.msra.mxu0 %v133
    %155 = vmatpush.bf16.msra.mxu0 %v132
    %156 = vmatmul.bf16.gmra.mxu0 %v76
    %v157 = vpop.f32.mrf.mxu0
    %v158 = vadd.f32 %v98, %v157
    %v159 = vpop.f32.mrf.mxu0
    %v160 = vadd.f32 %v98, %v159
    %161 = vmatmul.bf16.gmra.mxu0 %v77
    %v162 = vpop.f32.mrf.mxu0
    %v163 = vadd.f32 %v98, %v162
    %v164 = vpop.f32.mrf.mxu0
    %v165 = vadd.f32 %v98, %v164
    %166 = vmatmul.bf16.gmra.mxu0 %v78
    %v167 = vpop.f32.mrf.mxu0
    %v168 = vadd.f32 %v98, %v167
    %v169 = vpop.f32.mrf.mxu0
    %v170 = vadd.f32 %v98, %v169
    %171 = vmatmul.bf16.gmra.mxu0 %v79
    %v172 = vpop.f32.mrf.mxu0
    %v173 = vadd.f32 %v98, %v172
    %v174 = vpop.f32.mrf.mxu0
    %v175 = vadd.f32 %v98, %v174
    %176 = vdwg.mxu0
    %v177 = vmax.f32 %v158, 0.0
    %v178 = vmax.f32 %v160, 0.0
    %v179 = vmax.f32 %v163, 0.0
    %v180 = vmax.f32 %v165, 0.0
    %v181 = vmax.f32 %v168, 0.0
    %v182 = vmax.f32 %v170, 0.0
    %v183 = vmax.f32 %v173, 0.0
    %v184 = vmax.f32 %v175, 0.0
    %v185 = vpack.c.bf16 %v178, %v177
    %v186 = vpack.c.bf16 %v180, %v179
    %v187 = vpack.c.bf16 %v182, %v181
    %v188 = vpack.c.bf16 %v184, %v183
    %v189 = vld [vmem:[#allocation7] sm:$0xf]
    %v190 = vld [vmem:[#allocation7 + $0x4] sm:$0xf]
    %v191 = vld [vmem:[#allocation7 + $0x8] sm:$0xf]
    %v192 = vld [vmem:[#allocation7 + $0xc] sm:$0xf]
    %v193 = vld [vmem:[#allocation7 + $0x10] sm:$0xf]
    %v194 = vld [vmem:[#allocation7 + $0x14] sm:$0xf]
    %v195 = vld [vmem:[#allocation7 + $0x18] sm:$0xf]
    %v196 = vld [vmem:[#allocation7 + $0x1c] sm:$0xf]
    %v197 = vld [vmem:[#allocation7 + $0x20] sm:$0xf]
    %v198 = vld [vmem:[#allocation7 + $0x24] sm:$0xf]
    %v199 = vld [vmem:[#allocation7 + $0x28] sm:$0xf]
    %v200 = vld [vmem:[#allocation7 + $0x2c] sm:$0xf]
    %v201 = vld [vmem:[#allocation7 + $0x30] sm:$0xf]
    %v202 = vld [vmem:[#allocation7 + $0x34] sm:$0xf]
    %v203 = vld [vmem:[#allocation7 + $0x38] sm:$0xf]
    %v204 = vld [vmem:[#allocation7 + $0x3c] sm:$0xf]
    %v205 = vld [vmem:[%s4] sm:$0x1]
    %v207 = vperm.slane %v205, 0
    %v225 = vunpack.c.l.b16 %v189
    %v226 = vunpack.c.l.b16 %v190
    %v227 = vunpack.c.l.b16 %v191
    %v228 = vunpack.c.l.b16 %v192
    %v229 = vunpack.c.l.b16 %v193
    %v230 = vunpack.c.l.b16 %v194
    %v231 = vunpack.c.l.b16 %v195
    %v232 = vunpack.c.l.b16 %v196
    %v233 = vunpack.c.l.b16 %v197
    %v234 = vunpack.c.l.b16 %v198
    %v235 = vunpack.c.l.b16 %v199
    %v236 = vunpack.c.l.b16 %v200
    %v237 = vunpack.c.l.b16 %v201
    %v238 = vunpack.c.l.b16 %v202
    %v239 = vunpack.c.l.b16 %v203
    %v240 = vunpack.c.l.b16 %v204
    %v241 = vpack.c.b16 %v226, %v225
    %v242 = vpack.c.b16 %v228, %v227
    %v243 = vpack.c.b16 %v230, %v229
    %v244 = vpack.c.b16 %v232, %v231
    %v245 = vpack.c.b16 %v234, %v233
    %v246 = vpack.c.b16 %v236, %v235
    %v247 = vpack.c.b16 %v238, %v237
    %v248 = vpack.c.b16 %v240, %v239
    %257 = vmatpush.bf16.msra.mxu0 %v248
    %258 = vmatpush.bf16.msra.mxu0 %v247
    %259 = vmatpush.bf16.msra.mxu0 %v246
    %260 = vmatpush.bf16.msra.mxu0 %v245
    %261 = vmatpush.bf16.msra.mxu0 %v244
    %262 = vmatpush.bf16.msra.mxu0 %v243
    %263 = vmatpush.bf16.msra.mxu0 %v242
    %264 = vmatpush.bf16.msra.mxu0 %v241
    %265 = vmatmul.bf16.gmra.mxu0 %v185
    %v266 = vpop.f32.mrf.mxu0
    %v267 = vadd.f32 %v207, %v266
    %v268 = vpop.f32.mrf.mxu0
    %v269 = vadd.f32 %v207, %v268
    %270 = vmatmul.bf16.gmra.mxu0 %v186
    %v271 = vpop.f32.mrf.mxu0
    %v272 = vadd.f32 %v207, %v271
    %v273 = vpop.f32.mrf.mxu0
    %v274 = vadd.f32 %v207, %v273
    %275 = vmatmul.bf16.gmra.mxu0 %v187
    %v276 = vpop.f32.mrf.mxu0
    %v277 = vadd.f32 %v207, %v276
    %v278 = vpop.f32.mrf.mxu0
    %v279 = vadd.f32 %v207, %v278
    %280 = vmatmul.bf16.gmra.mxu0 %v188
    %v281 = vpop.f32.mrf.mxu0
    %v282 = vadd.f32 %v207, %v281
    %v283 = vpop.f32.mrf.mxu0
    %v284 = vadd.f32 %v207, %v283
    %285 = vdwg.mxu0
    %v286 = vmax.f32 %v267, 0.0
    %v287 = vmax.f32 %v269, 0.0
    %v288 = vmax.f32 %v272, 0.0
    %v289 = vmax.f32 %v274, 0.0
    %v290 = vmax.f32 %v277, 0.0
    %v291 = vmax.f32 %v279, 0.0
    %v292 = vmax.f32 %v282, 0.0
    %v293 = vmax.f32 %v284, 0.0
    %v294 = vadd.f32 %v286, %v68
    %v295 = vadd.f32 %v287, %v69
    %v296 = vadd.f32 %v288, %v70
    %v297 = vadd.f32 %v289, %v71
    %v298 = vadd.f32 %v290, %v72
    %v299 = vadd.f32 %v291, %v73
    %v300 = vadd.f32 %v292, %v74
    %v301 = vadd.f32 %v293, %v75
    %302 = vst [vmem:[#allocation8] sm:$0xff] %v294
    %303 = vst [vmem:[#allocation8 + $0x8] sm:$0xff] %v295
    %304 = vst [vmem:[#allocation8 + $0x10] sm:$0xff] %v296
    %305 = vst [vmem:[#allocation8 + $0x18] sm:$0xff] %v297
    %306 = vst [vmem:[#allocation8 + $0x20] sm:$0xff] %v298
    %307 = vst [vmem:[#allocation8 + $0x28] sm:$0xff] %v299
    %308 = vst [vmem:[#allocation8 + $0x30] sm:$0xff] %v300
    %309 = vst [vmem:[#allocation8 + $0x38] sm:$0xff] %v301
    // Predicated region
    $region34: #{tpu_custom_call.1} parent=1 // pred_check
      _
    $region35: #{tpu_custom_call.1} parent=1 // pred_check_branch
      %311 = sbr.rel (0) target = $region37
    $region36: #{tpu_custom_call.1} parent=1 // pred_region
      %313 = vsyncadd [#allocation4], 0
      %s314 = sshll.u32 [#allocation8], 4
      %s315 = int_to_ptr.vmem [resolvable:$true] %s314
      %s316 = sshll.u32 %s5, 4
      %s317 = int_to_ptr.hbm [resolvable:$true] %s316
      %322 = dma.vmem_to_hbm [thread:$0]  %s315, 1024, %s317, [#allocation4], 128, 128, 8
    $region37: #{tpu_custom_call.1} parent=1 // pred_fallthru
      _
    // Predicated region
    $region38: #{tpu_custom_call.1} parent=1 // pred_check
      _
    $region39: #{tpu_custom_call.1} parent=1 // pred_check_branch
      %324 = sbr.rel (0) target = $region41
    $region40: #{tpu_custom_call.1} parent=1 // pred_region
      %326 = dma.done [#allocation4], 1024
    $region41: #{tpu_custom_call.1} parent=1 // pred_fallthru
      _
    %327 = vsyncpa [#allocation3], 1
    %328 = vsyncpa [#allocation6], 1
    %329 = vsyncpa [#allocation4], 1

</llo_original>
